<compile_context>
chip_gen: v7x
topology: tpu7x:2x2x1
jax: 0.10.0
libtpu: 0.0.40
codegen_flags: <defaults>
</compile_context>

<pallas_src>
import jax
import jax.numpy as jnp
from jax.experimental import pallas as pl
from jax.experimental.pallas import tpu as pltpu

EPSILON = 1e-06          # used by sample(), not forward()
LOG_SIG_MAX = 2.0
LOG_SIG_MIN = -20.0
_BIG = 3.4e38            # "no clamp" bound for the mean columns


def _round_up(x, m):
    return ((x + m - 1) // m) * m


def gaussian_policy_kernel(
    state_ref,
    w1_ref, b1_ref, w2_ref, b2_ref,
    wh_ref, bh_ref, lo_ref, hi_ref,
    head_out_ref,
):
    # Layer 1 (normalization already folded into w1/b1): relu(s @ W1' + b1')
    x = state_ref[...]
    h1 = jnp.dot(x.astype(w1_ref.dtype), w1_ref[...],
                 preferred_element_type=jnp.float32) + b1_ref[...]
    h1 = jnp.maximum(h1, 0.0)

    # Layer 2: relu(h1 @ W2 + b2)
    h2 = jnp.dot(h1.astype(w2_ref.dtype), w2_ref[...],
                 preferred_element_type=jnp.float32) + b2_ref[...]
    h2 = jnp.maximum(h2, 0.0)

    # Fused mean|log_std head (lane-padded to a multiple of 128), then a single
    # min/max clamp: mean columns get +/-BIG bounds (pass-through), log_std
    # columns get [-20, 2].  Pad columns are stripped outside the kernel.
    head = jnp.dot(h2.astype(wh_ref.dtype), wh_ref[...],
                   preferred_element_type=jnp.float32) + bh_ref[...]
    head_out_ref[...] = jnp.minimum(jnp.maximum(head, lo_ref[...]), hi_ref[...])


def gaussian_policy_forward(state, params, *, weights_dtype=jnp.bfloat16,
                            tile_b=None):
    f32 = jnp.float32
    B, num_inputs = state.shape
    hidden = params["w1"].shape[1]
    num_actions = params["wm"].shape[1]

    # ---------- one-time parameter transforms (constant folding) ----------
    inv_xstd = (1.0 / params["xstd"]).astype(f32)                  # (1, in)
    w1 = params["w1"].astype(f32) * inv_xstd.reshape(num_inputs, 1)
    b1 = params["b1"].astype(f32) - (params["xmean"].astype(f32) * inv_xstd) @ params["w1"].astype(f32)
    w2 = params["w2"].astype(f32)
    b2 = params["b2"].astype(f32)
    head_w = jnp.concatenate([params["wm"], params["ws"]], axis=1).astype(f32)
    head_b = jnp.concatenate([params["bm"], params["bs"]], axis=1).astype(f32)

    # ---------- MXU-alignment padding (one-time, zero-padded) ----------
    sublane = 16 if jnp.dtype(weights_dtype) == jnp.dtype(jnp.bfloat16) else 8
    in_pad = _round_up(num_inputs, sublane)
    hid_pad = _round_up(hidden, 128)
    head_dim = 2 * num_actions
    head_pad = _round_up(head_dim, 128)

    w1 = jnp.pad(w1, ((0, in_pad - num_inputs), (0, hid_pad - hidden)))
    b1 = jnp.pad(b1, ((0, 0), (0, hid_pad - hidden)))
    w2 = jnp.pad(w2, ((0, hid_pad - hidden), (0, hid_pad - hidden)))
    b2 = jnp.pad(b2, ((0, 0), (0, hid_pad - hidden)))
    head_w = jnp.pad(head_w, ((0, hid_pad - hidden), (0, head_pad - head_dim)))
    head_b = jnp.pad(head_b, ((0, 0), (0, head_pad - head_dim)))

    w1 = w1.astype(weights_dtype)
    w2 = w2.astype(weights_dtype)
    head_w = head_w.astype(weights_dtype)

    # lo/hi clamp rows: mean columns pass through, log_std columns clamped.
    col = jnp.arange(head_pad)
    is_logstd = (col >= num_actions) & (col < head_dim)
    lo = jnp.where(is_logstd, LOG_SIG_MIN, -_BIG).astype(f32).reshape(1, head_pad)
    hi = jnp.where(is_logstd, LOG_SIG_MAX, _BIG).astype(f32).reshape(1, head_pad)

    # ---------- batch tiling ----------
    if tile_b is None:
        max_tb = 1024
        # >=2 tiles once B >= 16 (feeds both v7x TensorCores); TB derived from
        # the tile count so padding waste stays < 8 rows per tile.
        ntiles = max(pl.cdiv(B, max_tb), 2 if B >= 16 else 1)
        TB = _round_up(pl.cdiv(B, ntiles), 8)
    else:
        TB = tile_b
    grid_b = pl.cdiv(B, TB)
    B_pad = grid_b * TB

    state_p = state.astype(f32)
    if (B_pad != B) or (in_pad != num_inputs):
        state_p = jnp.pad(state_p, ((0, B_pad - B), (0, in_pad - num_inputs)))

    itemsize = jnp.dtype(weights_dtype).itemsize
    weight_bytes = itemsize * (w1.size + w2.size + head_w.size)
    bias_bytes = 4 * (2 * hid_pad + 3 * head_pad)
    io_bytes = 4 * (B_pad * in_pad + B_pad * head_pad)
    flops = 2 * B_pad * (in_pad * hid_pad + hid_pad * hid_pad + hid_pad * head_pad)
    cost = pl.CostEstimate(flops=flops, transcendentals=0,
                           bytes_accessed=io_bytes + weight_bytes + bias_bytes)

    def _call(single_buffer_weights):
        # VMEM budget: resident weights (+x2 if double-buffered) + biases +
        # double-buffered state/output tiles + h1/h2 intermediates + headroom.
        vmem_need = (weight_bytes * (1 if single_buffer_weights else 2)
                     + bias_bytes
                     + 2 * 4 * TB * (in_pad + head_pad)
                     + 2 * 4 * TB * hid_pad)
        vmem_limit = int(min(max(vmem_need + (4 << 20), 16 << 20), 64 << 20))

        def const_spec(rows, cols):
            if single_buffer_weights:
                # Block index never changes -> single buffer is enough.
                return pl.BlockSpec((rows, cols), lambda i: (0, 0),
                                    pipeline_mode=pl.Buffered(1))
            return pl.BlockSpec((rows, cols), lambda i: (0, 0))

        def batch_spec(cols):
            return pl.BlockSpec((TB, cols), lambda i: (i, 0))

        return pl.pallas_call(
            gaussian_policy_kernel,
            out_shape=jax.ShapeDtypeStruct((B_pad, head_pad), jnp.float32),
            grid=(grid_b,),
            in_specs=[
                batch_spec(in_pad),                 # state tile (pipelined)
                const_spec(in_pad, hid_pad),        # w1' (normalization folded)
                const_spec(1, hid_pad),             # b1'
                const_spec(hid_pad, hid_pad),       # w2
                const_spec(1, hid_pad),             # b2
                const_spec(hid_pad, head_pad),      # fused head weight
                const_spec(1, head_pad),            # fused head bias
                const_spec(1, head_pad),            # lo clamp row
                const_spec(1, head_pad),            # hi clamp row
            ],
            out_specs=batch_spec(head_pad),
            compiler_params=pltpu.CompilerParams(
                dimension_semantics=("parallel",),
                vmem_limit_bytes=vmem_limit,
            ),
            cost_estimate=cost,
        )(state_p, w1, b1, w2, b2, head_w, head_b, lo, hi)

    try:
        head_out = _call(True)
    except Exception:
        # Fallback if this JAX build rejects single-buffered BlockSpecs.
        head_out = _call(False)

    # TODO(synk): optionally emit a transposed (head_pad, TB) output to avoid
    # writing the 128-lane padded slab, once the consumer layout is known.
    head_out = head_out[:B]
    mean = head_out[:, :num_actions]
    log_std = head_out[:, num_actions:head_dim]
    return mean, log_std


def xavier_uniform(key, fan_in, fan_out):
    # gain=1 xavier_uniform_, matching torch.nn.init.xavier_uniform_
    limit = jnp.sqrt(6.0 / (fan_in + fan_out))
    # weight stored transposed: [fan_in, fan_out]
    return jax.random.uniform(
        key, (fan_in, fan_out), minval=-limit, maxval=limit, dtype=jnp.float32
    )


def init_params(key, num_inputs, num_actions, hidden_dim):
    k1, k2, k3, k4, k5, k6 = jax.random.split(key, 6)
    return {
        "w1": xavier_uniform(k1, num_inputs, hidden_dim),
        "b1": jnp.zeros((1, hidden_dim), jnp.float32),
        "w2": xavier_uniform(k2, hidden_dim, hidden_dim),
        "b2": jnp.zeros((1, hidden_dim), jnp.float32),
        "wm": xavier_uniform(k3, hidden_dim, num_actions),
        "bm": jnp.zeros((1, num_actions), jnp.float32),
        "ws": xavier_uniform(k4, hidden_dim, num_actions),
        "bs": jnp.zeros((1, num_actions), jnp.float32),
        # deterministic normalization stats (xMean, xStd from the ctor)
        "xmean": jax.random.normal(k5, (1, num_inputs), jnp.float32) * 0.1,
        "xstd": 1.0 + jax.random.uniform(k6, (1, num_inputs), jnp.float32),
    }


def reference_forward(state, params):
    x = (state - params["xmean"]) / params["xstd"]
    h1 = jnp.maximum(x @ params["w1"] + params["b1"], 0.0)
    h2 = jnp.maximum(h1 @ params["w2"] + params["b2"], 0.0)
    mean = h2 @ params["wm"] + params["bm"]
    log_std = jnp.clip(h2 @ params["ws"] + params["bs"], LOG_SIG_MIN, LOG_SIG_MAX)
    return mean, log_std


if __name__ == "__main__":
    # small shapes consistent with the module
    B, num_inputs, num_actions, hidden_dim = 8, 16, 8, 32

    key = jax.random.PRNGKey(0)
    k_param, k_state = jax.random.split(key)
    params = init_params(k_param, num_inputs, num_actions, hidden_dim)
    state = jax.random.normal(k_state, (B, num_inputs), dtype=jnp.float32)

    mean_ref, log_std_ref = reference_forward(state, params)

    # Exact-semantics path (f32 weights): tight check vs plain-JAX reference.
    mean32, log_std32 = gaussian_policy_forward(state, params,
                                                weights_dtype=jnp.float32)
    mean32, log_std32 = jax.block_until_ready((mean32, log_std32))
    assert mean32.shape == (B, num_actions) and log_std32.shape == (B, num_actions)
    assert jnp.allclose(mean32, mean_ref, atol=1e-4, rtol=1e-4), "mean mismatch (f32)"
    assert jnp.allclose(log_std32, log_std_ref, atol=1e-4, rtol=1e-4), "log_std mismatch (f32)"

    # Production default (bf16 weights, f32 accumulation): loose check.
    mean_bf, log_std_bf = gaussian_policy_forward(state, params)
    mean_bf, log_std_bf = jax.block_until_ready((mean_bf, log_std_bf))
    assert mean_bf.shape == (B, num_actions) and log_std_bf.shape == (B, num_actions)
    assert jnp.allclose(mean_bf, mean_ref, atol=1e-1, rtol=1e-1), "mean mismatch (bf16)"
    assert jnp.allclose(log_std_bf, log_std_ref, atol=1e-1, rtol=1e-1), "log_std mismatch (bf16)"

    print("KERNEL_OK")
</pallas_src>

<mosaic_0001>
module attributes {stable_mosaic.version = 11 : i64} {
  func.func @gaussian_policy_kernel(%arg0: i32, %arg1: memref<8x16xf32, #tpu.memory_space<vmem>>, %arg2: memref<16x128xf32, #tpu.memory_space<vmem>>, %arg3: memref<1x128xf32, #tpu.memory_space<vmem>>, %arg4: memref<128x128xf32, #tpu.memory_space<vmem>>, %arg5: memref<1x128xf32, #tpu.memory_space<vmem>>, %arg6: memref<128x128xf32, #tpu.memory_space<vmem>>, %arg7: memref<1x128xf32, #tpu.memory_space<vmem>>, %arg8: memref<1x128xf32, #tpu.memory_space<vmem>>, %arg9: memref<1x128xf32, #tpu.memory_space<vmem>>, %arg10: memref<8x128xf32, #tpu.memory_space<vmem>>) attributes {dimension_semantics = [#tpu.dimension_semantics<parallel>], iteration_bounds = array<i64: 1>, scalar_prefetch = 0 : i64, scratch_operands = 0 : i64, tpu.core_type = #tpu.core_type<tc>, window_params = [{transform_indices = @transform_0, window_bounds = array<i64: 8, 16>}, {pipeline_mode = #tpu.pipeline_mode<synchronous>, transform_indices = @transform_1, window_bounds = array<i64: 16, 128>}, {pipeline_mode = #tpu.pipeline_mode<synchronous>, transform_indices = @transform_2, window_bounds = array<i64: 1, 128>}, {pipeline_mode = #tpu.pipeline_mode<synchronous>, transform_indices = @transform_3, window_bounds = array<i64: 128, 128>}, {pipeline_mode = #tpu.pipeline_mode<synchronous>, transform_indices = @transform_4, window_bounds = array<i64: 1, 128>}, {pipeline_mode = #tpu.pipeline_mode<synchronous>, transform_indices = @transform_5, window_bounds = array<i64: 128, 128>}, {pipeline_mode = #tpu.pipeline_mode<synchronous>, transform_indices = @transform_6, window_bounds = array<i64: 1, 128>}, {pipeline_mode = #tpu.pipeline_mode<synchronous>, transform_indices = @transform_7, window_bounds = array<i64: 1, 128>}, {pipeline_mode = #tpu.pipeline_mode<synchronous>, transform_indices = @transform_8, window_bounds = array<i64: 1, 128>}, {transform_indices = @transform_9, window_bounds = array<i64: 8, 128>}]} {
    %c0 = arith.constant 0 : index
    %c0_0 = arith.constant 0 : index
    %0 = vector.load %arg1[%c0, %c0_0] : memref<8x16xf32, #tpu.memory_space<vmem>>, vector<8x16xf32>
    %c0_1 = arith.constant 0 : index
    %c0_2 = arith.constant 0 : index
    %1 = vector.load %arg2[%c0_1, %c0_2] : memref<16x128xf32, #tpu.memory_space<vmem>>, vector<16x128xf32>
    %cst = arith.constant dense<0.000000e+00> : vector<8x128xf32>
    %2 = tpu.matmul %0, %1, %cst {dimension_numbers = #tpu.dot_dimension_numbers<[1], [0], [0], [1], [0, 0, 1, 1], [], []>} : vector<8x16xf32>, vector<16x128xf32>, vector<8x128xf32> -> vector<8x128xf32>
    %c0_3 = arith.constant 0 : index
    %c0_4 = arith.constant 0 : index
    %3 = vector.load %arg3[%c0_3, %c0_4] : memref<1x128xf32, #tpu.memory_space<vmem>>, vector<1x128xf32>
    %4 = vector.broadcast %3 : vector<1x128xf32> to vector<8x128xf32>
    %5 = arith.addf %2, %4 : vector<8x128xf32>
    %cst_5 = arith.constant 0.000000e+00 : f32
    %6 = vector.broadcast %cst_5 : f32 to vector<8x128xf32>
    %7 = arith.maximumf %5, %6 : vector<8x128xf32>
    %c0_6 = arith.constant 0 : index
    %c0_7 = arith.constant 0 : index
    %8 = vector.load %arg4[%c0_6, %c0_7] : memref<128x128xf32, #tpu.memory_space<vmem>>, vector<128x128xf32>
    %cst_8 = arith.constant dense<0.000000e+00> : vector<8x128xf32>
    %9 = tpu.matmul %7, %8, %cst_8 {dimension_numbers = #tpu.dot_dimension_numbers<[1], [0], [0], [1], [0, 0, 1, 1], [], []>} : vector<8x128xf32>, vector<128x128xf32>, vector<8x128xf32> -> vector<8x128xf32>
    %c0_9 = arith.constant 0 : index
    %c0_10 = arith.constant 0 : index
    %10 = vector.load %arg5[%c0_9, %c0_10] : memref<1x128xf32, #tpu.memory_space<vmem>>, vector<1x128xf32>
    %11 = vector.broadcast %10 : vector<1x128xf32> to vector<8x128xf32>
    %12 = arith.addf %9, %11 : vector<8x128xf32>
    %cst_11 = arith.constant 0.000000e+00 : f32
    %13 = vector.broadcast %cst_11 : f32 to vector<8x128xf32>
    %14 = arith.maximumf %12, %13 : vector<8x128xf32>
    %c0_12 = arith.constant 0 : index
    %c0_13 = arith.constant 0 : index
    %15 = vector.load %arg6[%c0_12, %c0_13] : memref<128x128xf32, #tpu.memory_space<vmem>>, vector<128x128xf32>
    %cst_14 = arith.constant dense<0.000000e+00> : vector<8x128xf32>
    %16 = tpu.matmul %14, %15, %cst_14 {dimension_numbers = #tpu.dot_dimension_numbers<[1], [0], [0], [1], [0, 0, 1, 1], [], []>} : vector<8x128xf32>, vector<128x128xf32>, vector<8x128xf32> -> vector<8x128xf32>
    %c0_15 = arith.constant 0 : index
    %c0_16 = arith.constant 0 : index
    %17 = vector.load %arg7[%c0_15, %c0_16] : memref<1x128xf32, #tpu.memory_space<vmem>>, vector<1x128xf32>
    %18 = vector.broadcast %17 : vector<1x128xf32> to vector<8x128xf32>
    %19 = arith.addf %16, %18 : vector<8x128xf32>
    %c0_17 = arith.constant 0 : index
    %c0_18 = arith.constant 0 : index
    %20 = vector.load %arg8[%c0_17, %c0_18] : memref<1x128xf32, #tpu.memory_space<vmem>>, vector<1x128xf32>
    %21 = vector.broadcast %20 : vector<1x128xf32> to vector<8x128xf32>
    %22 = arith.maximumf %19, %21 : vector<8x128xf32>
    %c0_19 = arith.constant 0 : index
    %c0_20 = arith.constant 0 : index
    %23 = vector.load %arg9[%c0_19, %c0_20] : memref<1x128xf32, #tpu.memory_space<vmem>>, vector<1x128xf32>
    %24 = vector.broadcast %23 : vector<1x128xf32> to vector<8x128xf32>
    %25 = arith.minimumf %22, %24 : vector<8x128xf32>
    %c0_21 = arith.constant 0 : index
    %c0_22 = arith.constant 0 : index
    %26 = vector.load %arg10[%c0_21, %c0_22] : memref<8x128xf32, #tpu.memory_space<vmem>>, vector<8x128xf32>
    tpu.vector_store %arg10[%c0_21, %c0_22], %25 {strides = array<i32>} : memref<8x128xf32, #tpu.memory_space<vmem>>, vector<8x128xf32>,
    return
  }
  func.func @transform_0(%arg0: i32) -> (i32, i32) {
    %c0_i32 = arith.constant 0 : i32
    %c0_i32_0 = arith.constant 0 : i32
    return %arg0, %c0_i32 : i32, i32
  }
  func.func @transform_1(%arg0: i32) -> (i32, i32) {
    %c0_i32 = arith.constant 0 : i32
    %c0_i32_0 = arith.constant 0 : i32
    %c0_i32_1 = arith.constant 0 : i32
    return %c0_i32, %c0_i32_0 : i32, i32
  }
  func.func @transform_2(%arg0: i32) -> (i32, i32) {
    %c0_i32 = arith.constant 0 : i32
    %c0_i32_0 = arith.constant 0 : i32
    %c0_i32_1 = arith.constant 0 : i32
    return %c0_i32, %c0_i32_0 : i32, i32
  }
  func.func @transform_3(%arg0: i32) -> (i32, i32) {
    %c0_i32 = arith.constant 0 : i32
    %c0_i32_0 = arith.constant 0 : i32
    %c0_i32_1 = arith.constant 0 : i32
    return %c0_i32, %c0_i32_0 : i32, i32
  }
  func.func @transform_4(%arg0: i32) -> (i32, i32) {
    %c0_i32 = arith.constant 0 : i32
    %c0_i32_0 = arith.constant 0 : i32
    %c0_i32_1 = arith.constant 0 : i32
    return %c0_i32, %c0_i32_0 : i32, i32
  }
  func.func @transform_5(%arg0: i32) -> (i32, i32) {
    %c0_i32 = arith.constant 0 : i32
    %c0_i32_0 = arith.constant 0 : i32
    %c0_i32_1 = arith.constant 0 : i32
    return %c0_i32, %c0_i32_0 : i32, i32
  }
  func.func @transform_6(%arg0: i32) -> (i32, i32) {
    %c0_i32 = arith.constant 0 : i32
    %c0_i32_0 = arith.constant 0 : i32
    %c0_i32_1 = arith.constant 0 : i32
    return %c0_i32, %c0_i32_0 : i32, i32
  }
  func.func @transform_7(%arg0: i32) -> (i32, i32) {
    %c0_i32 = arith.constant 0 : i32
    %c0_i32_0 = arith.constant 0 : i32
    %c0_i32_1 = arith.constant 0 : i32
    return %c0_i32, %c0_i32_0 : i32, i32
  }
  func.func @transform_8(%arg0: i32) -> (i32, i32) {
    %c0_i32 = arith.constant 0 : i32
    %c0_i32_0 = arith.constant 0 : i32
    %c0_i32_1 = arith.constant 0 : i32
    return %c0_i32, %c0_i32_0 : i32, i32
  }
  func.func @transform_9(%arg0: i32) -> (i32, i32) {
    %c0_i32 = arith.constant 0 : i32
    %c0_i32_0 = arith.constant 0 : i32
    return %arg0, %c0_i32 : i32, i32
  }
}

module attributes {stable_mosaic.version = 11 : i64} {
  func.func @gaussian_policy_kernel(%arg0: i32, %arg1: memref<8x16xf32, #tpu.memory_space<vmem>>, %arg2: memref<16x128xf32, #tpu.memory_space<vmem>>, %arg3: memref<1x128xf32, #tpu.memory_space<vmem>>, %arg4: memref<128x128xf32, #tpu.memory_space<vmem>>, %arg5: memref<1x128xf32, #tpu.memory_space<vmem>>, %arg6: memref<128x128xf32, #tpu.memory_space<vmem>>, %arg7: memref<1x128xf32, #tpu.memory_space<vmem>>, %arg8: memref<1x128xf32, #tpu.memory_space<vmem>>, %arg9: memref<1x128xf32, #tpu.memory_space<vmem>>, %arg10: memref<8x128xf32, #tpu.memory_space<vmem>>) attributes {dimension_semantics = [#tpu.dimension_semantics<parallel>], iteration_bounds = array<i64: 1>, scalar_prefetch = 0 : i64, scratch_operands = 0 : i64, tpu.core_type = #tpu.core_type<tc>, window_params = [{transform_indices = @transform_0, window_bounds = array<i64: 8, 16>}, {pipeline_mode = #tpu.pipeline_mode<synchronous>, transform_indices = @transform_1, window_bounds = array<i64: 16, 128>}, {pipeline_mode = #tpu.pipeline_mode<synchronous>, transform_indices = @transform_2, window_bounds = array<i64: 1, 128>}, {pipeline_mode = #tpu.pipeline_mode<synchronous>, transform_indices = @transform_3, window_bounds = array<i64: 128, 128>}, {pipeline_mode = #tpu.pipeline_mode<synchronous>, transform_indices = @transform_4, window_bounds = array<i64: 1, 128>}, {pipeline_mode = #tpu.pipeline_mode<synchronous>, transform_indices = @transform_5, window_bounds = array<i64: 128, 128>}, {pipeline_mode = #tpu.pipeline_mode<synchronous>, transform_indices = @transform_6, window_bounds = array<i64: 1, 128>}, {pipeline_mode = #tpu.pipeline_mode<synchronous>, transform_indices = @transform_7, window_bounds = array<i64: 1, 128>}, {pipeline_mode = #tpu.pipeline_mode<synchronous>, transform_indices = @transform_8, window_bounds = array<i64: 1, 128>}, {transform_indices = @transform_9, window_bounds = array<i64: 8, 128>}]} {
    %c0 = arith.constant 0 : index
    %c0_0 = arith.constant 0 : index
    %0 = vector.load %arg1[%c0, %c0_0] : memref<8x16xf32, #tpu.memory_space<vmem>>, vector<8x16xf32>
    %c0_1 = arith.constant 0 : index
    %c0_2 = arith.constant 0 : index
    %1 = vector.load %arg2[%c0_1, %c0_2] : memref<16x128xf32, #tpu.memory_space<vmem>>, vector<16x128xf32>
    %cst = arith.constant dense<0.000000e+00> : vector<8x128xf32>
    %2 = tpu.matmul %0, %1, %cst {dimension_numbers = #tpu.dot_dimension_numbers<[1], [0], [0], [1], [0, 0, 1, 1], [], []>} : vector<8x16xf32>, vector<16x128xf32>, vector<8x128xf32> -> vector<8x128xf32>
    %c0_3 = arith.constant 0 : index
    %c0_4 = arith.constant 0 : index
    %3 = vector.load %arg3[%c0_3, %c0_4] : memref<1x128xf32, #tpu.memory_space<vmem>>, vector<1x128xf32>
    %4 = vector.broadcast %3 : vector<1x128xf32> to vector<8x128xf32>
    %5 = arith.addf %2, %4 : vector<8x128xf32>
    %cst_5 = arith.constant 0.000000e+00 : f32
    %6 = vector.broadcast %cst_5 : f32 to vector<8x128xf32>
    %7 = arith.maximumf %5, %6 : vector<8x128xf32>
    %c0_6 = arith.constant 0 : index
    %c0_7 = arith.constant 0 : index
    %8 = vector.load %arg4[%c0_6, %c0_7] : memref<128x128xf32, #tpu.memory_space<vmem>>, vector<128x128xf32>
    %cst_8 = arith.constant dense<0.000000e+00> : vector<8x128xf32>
    %9 = tpu.matmul %7, %8, %cst_8 {dimension_numbers = #tpu.dot_dimension_numbers<[1], [0], [0], [1], [0, 0, 1, 1], [], []>} : vector<8x128xf32>, vector<128x128xf32>, vector<8x128xf32> -> vector<8x128xf32>
    %c0_9 = arith.constant 0 : index
    %c0_10 = arith.constant 0 : index
    %10 = vector.load %arg5[%c0_9, %c0_10] : memref<1x128xf32, #tpu.memory_space<vmem>>, vector<1x128xf32>
    %11 = vector.broadcast %10 : vector<1x128xf32> to vector<8x128xf32>
    %12 = arith.addf %9, %11 : vector<8x128xf32>
    %cst_11 = arith.constant 0.000000e+00 : f32
    %13 = vector.broadcast %cst_11 : f32 to vector<8x128xf32>
    %14 = arith.maximumf %12, %13 : vector<8x128xf32>
    %c0_12 = arith.constant 0 : index
    %c0_13 = arith.constant 0 : index
    %15 = vector.load %arg6[%c0_12, %c0_13] : memref<128x128xf32, #tpu.memory_space<vmem>>, vector<128x128xf32>
    %cst_14 = arith.constant dense<0.000000e+00> : vector<8x128xf32>
    %16 = tpu.matmul %14, %15, %cst_14 {dimension_numbers = #tpu.dot_dimension_numbers<[1], [0], [0], [1], [0, 0, 1, 1], [], []>} : vector<8x128xf32>, vector<128x128xf32>, vector<8x128xf32> -> vector<8x128xf32>
    %c0_15 = arith.constant 0 : index
    %c0_16 = arith.constant 0 : index
    %17 = vector.load %arg7[%c0_15, %c0_16] : memref<1x128xf32, #tpu.memory_space<vmem>>, vector<1x128xf32>
    %18 = vector.broadcast %17 : vector<1x128xf32> to vector<8x128xf32>
    %19 = arith.addf %16, %18 : vector<8x128xf32>
    %c0_17 = arith.constant 0 : index
    %c0_18 = arith.constant 0 : index
    %20 = vector.load %arg8[%c0_17, %c0_18] : memref<1x128xf32, #tpu.memory_space<vmem>>, vector<1x128xf32>
    %21 = vector.broadcast %20 : vector<1x128xf32> to vector<8x128xf32>
    %22 = arith.maximumf %19, %21 : vector<8x128xf32>
    %c0_19 = arith.constant 0 : index
    %c0_20 = arith.constant 0 : index
    %23 = vector.load %arg9[%c0_19, %c0_20] : memref<1x128xf32, #tpu.memory_space<vmem>>, vector<1x128xf32>
    %24 = vector.broadcast %23 : vector<1x128xf32> to vector<8x128xf32>
    %25 = arith.minimumf %22, %24 : vector<8x128xf32>
    %c0_21 = arith.constant 0 : index
    %c0_22 = arith.constant 0 : index
    %26 = vector.load %arg10[%c0_21, %c0_22] : memref<8x128xf32, #tpu.memory_space<vmem>>, vector<8x128xf32>
    tpu.vector_store %arg10[%c0_21, %c0_22], %25 {strides = array<i32>} : memref<8x128xf32, #tpu.memory_space<vmem>>, vector<8x128xf32>,
    return
  }
  func.func @transform_0(%arg0: i32) -> (i32, i32) {
    %c0_i32 = arith.constant 0 : i32
    %c0_i32_0 = arith.constant 0 : i32
    return %arg0, %c0_i32 : i32, i32
  }
  func.func @transform_1(%arg0: i32) -> (i32, i32) {
    %c0_i32 = arith.constant 0 : i32
    %c0_i32_0 = arith.constant 0 : i32
    %c0_i32_1 = arith.constant 0 : i32
    return %c0_i32, %c0_i32_0 : i32, i32
  }
  func.func @transform_2(%arg0: i32) -> (i32, i32) {
    %c0_i32 = arith.constant 0 : i32
    %c0_i32_0 = arith.constant 0 : i32
    %c0_i32_1 = arith.constant 0 : i32
    return %c0_i32, %c0_i32_0 : i32, i32
  }
  func.func @transform_3(%arg0: i32) -> (i32, i32) {
    %c0_i32 = arith.constant 0 : i32
    %c0_i32_0 = arith.constant 0 : i32
    %c0_i32_1 = arith.constant 0 : i32
    return %c0_i32, %c0_i32_0 : i32, i32
  }
  func.func @transform_4(%arg0: i32) -> (i32, i32) {
    %c0_i32 = arith.constant 0 : i32
    %c0_i32_0 = arith.constant 0 : i32
    %c0_i32_1 = arith.constant 0 : i32
    return %c0_i32, %c0_i32_0 : i32, i32
  }
  func.func @transform_5(%arg0: i32) -> (i32, i32) {
    %c0_i32 = arith.constant 0 : i32
    %c0_i32_0 = arith.constant 0 : i32
    %c0_i32_1 = arith.constant 0 : i32
    return %c0_i32, %c0_i32_0 : i32, i32
  }
  func.func @transform_6(%arg0: i32) -> (i32, i32) {
    %c0_i32 = arith.constant 0 : i32
    %c0_i32_0 = arith.constant 0 : i32
    %c0_i32_1 = arith.constant 0 : i32
    return %c0_i32, %c0_i32_0 : i32, i32
  }
  func.func @transform_7(%arg0: i32) -> (i32, i32) {
    %c0_i32 = arith.constant 0 : i32
    %c0_i32_0 = arith.constant 0 : i32
    %c0_i32_1 = arith.constant 0 : i32
    return %c0_i32, %c0_i32_0 : i32, i32
  }
  func.func @transform_8(%arg0: i32) -> (i32, i32) {
    %c0_i32 = arith.constant 0 : i32
    %c0_i32_0 = arith.constant 0 : i32
    %c0_i32_1 = arith.constant 0 : i32
    return %c0_i32, %c0_i32_0 : i32, i32
  }
  func.func @transform_9(%arg0: i32) -> (i32, i32) {
    %c0_i32 = arith.constant 0 : i32
    %c0_i32_0 = arith.constant 0 : i32
    return %arg0, %c0_i32 : i32, i32
  }
}

</mosaic_0001>

<llo_original>
// kernel: tpu_custom_call.1
$region0: #{tpu_custom_call.1}
  #allocation0 [shape = 'u32[]', space=smem, size = 0x4, offset = 0x4, fixed_abs, tag = 'smem constant byte address 0x4 - core index']
  #allocation1 [shape = 'u32[144,128]{1,0:T(1,128)}', space=vmem, size = 0x12000, scoped, tag = 'internal scratch']
  %s0 = inlined_call_operand.hbm [shape: f32[8,16], index: 0, kind: input, shape index: {}]
  %s1 = inlined_call_operand.hbm [shape: f32[16,128], index: 1, kind: input, shape index: {}]
  %s2 = inlined_call_operand.vmem [shape: f32[1,128], index: 2, kind: input, shape index: {}]
  %s3 = inlined_call_operand.hbm [shape: f32[128,128], index: 3, kind: input, shape index: {}]
  %s4 = inlined_call_operand.vmem [shape: f32[1,128], index: 4, kind: input, shape index: {}]
  %s5 = inlined_call_operand.hbm [shape: f32[128,128], index: 5, kind: input, shape index: {}]
  %s6 = inlined_call_operand.vmem [shape: f32[1,128], index: 6, kind: input, shape index: {}]
  %s7 = inlined_call_operand.vmem [shape: f32[1,128], index: 7, kind: input, shape index: {}]
  %s8 = inlined_call_operand.vmem [shape: f32[1,128], index: 8, kind: input, shape index: {}]
  %s9 = inlined_call_operand.hbm [shape: f32[8,128], index: 9, kind: output, shape index: {}]
  %s10 = sld [smem:[#allocation0]]
  $region62: #{tpu_custom_call.1} parent=0
    _
  %s12 = ssub.s32 1, %s10
  %s13 = scalar_select 0, %s12, %s10
  $region1: #{tpu_custom_call.1} parent=0
    #allocation2 [shape = 'u8[4096]{0}', space=vmem, size = 0x1000, scoped, tag = 'input window, operand 0, single buffered']
    #allocation3 [shape = 's32[1]{0}', space=sflag, size = 0x4, scoped, tag = 'scoped memory for tpu_custom_call.1']
    #allocation4 [shape = 's32[1]{0}', space=sflag, size = 0x4, scoped, tag = 'scoped memory for tpu_custom_call.1']
    #allocation5 [shape = 'u8[8192]{0}', space=vmem, size = 0x2000, scoped, tag = 'input window, operand 1, single buffered']
    #allocation6 [shape = 's32[1]{0}', space=sflag, size = 0x4, scoped, tag = 'scoped memory for tpu_custom_call.1']
    #allocation7 [shape = 'u8[65536]{0}', space=vmem, size = 0x10000, scoped, tag = 'input window, operand 3, single buffered']
    #allocation8 [shape = 'u8[65536]{0}', space=vmem, size = 0x10000, scoped, tag = 'input window, operand 5, single buffered']
    #allocation9 [shape = 's32[1]{0}', space=sflag, size = 0x4, scoped, tag = 'scoped memory for tpu_custom_call.1']
    #allocation10 [shape = 'u8[4096]{0}', space=vmem, size = 0x1000, scoped, tag = 'output window, operand 0, single buffered']
    %14 = vsyncpa [#allocation3], 0
    %15 = vsyncpa [#allocation6], 0
    %16 = vsyncpa [#allocation9], 0
    %17 = vsyncpa [#allocation4], 0
    // Predicated region
    $region2: #{tpu_custom_call.1} parent=1 // pred_check
      _
    $region3: #{tpu_custom_call.1} parent=1 // pred_check_branch
      %19 = sbr.rel (0) target = $region5
    $region4: #{tpu_custom_call.1} parent=1 // pred_region
      %s21 = ssub.s32 128, 128
      %22 = vsyncadd [#allocation3], %s21
      %s24 = sshll.u32 [#allocation2], 4
      %s25 = int_to_ptr.vmem [resolvable:$true] %s24
      %27 = dma.hbm_to_vmem [thread:$0]  %s0, 128, %s25, [#allocation3]
    $region5: #{tpu_custom_call.1} parent=1 // pred_fallthru
      _
    // Predicated region
    $region6: #{tpu_custom_call.1} parent=1 // pred_check
      _
    $region7: #{tpu_custom_call.1} parent=1 // pred_check_branch
      %29 = sbr.rel (0) target = $region9
    $region8: #{tpu_custom_call.1} parent=1 // pred_region
      %s31 = ssub.s32 256, 256
      %32 = vsyncadd [#allocation6], %s31
      %s33 = sshll.u32 [#allocation5], 4
      %s34 = int_to_ptr.vmem [resolvable:$true] %s33
      %39 = dma.hbm_to_vmem [thread:$0]  %s1, 256, %s34, [#allocation6], 128, 128, 8
    $region9: #{tpu_custom_call.1} parent=1 // pred_fallthru
      _
    // Predicated region
    $region10: #{tpu_custom_call.1} parent=1 // pred_check
      _
    $region11: #{tpu_custom_call.1} parent=1 // pred_check_branch
      %41 = sbr.rel (0) target = $region13
    $region12: #{tpu_custom_call.1} parent=1 // pred_region
      _
    $region13: #{tpu_custom_call.1} parent=1 // pred_fallthru
      _
    // Predicated region
    $region14: #{tpu_custom_call.1} parent=1 // pred_check
      _
    $region15: #{tpu_custom_call.1} parent=1 // pred_check_branch
      %43 = sbr.rel (0) target = $region17
    $region16: #{tpu_custom_call.1} parent=1 // pred_region
      %s45 = ssub.s32 2048, 2048
      %46 = vsyncadd [#allocation6], %s45
      %s47 = sshll.u32 [#allocation7], 4
      %s48 = int_to_ptr.vmem [resolvable:$true] %s47
      %53 = dma.hbm_to_vmem [thread:$0]  %s3, 2048, %s48, [#allocation6], 128, 128, 8
    $region17: #{tpu_custom_call.1} parent=1 // pred_fallthru
      _
    // Predicated region
    $region18: #{tpu_custom_call.1} parent=1 // pred_check
      _
    $region19: #{tpu_custom_call.1} parent=1 // pred_check_branch
      %55 = sbr.rel (0) target = $region21
    $region20: #{tpu_custom_call.1} parent=1 // pred_region
      _
    $region21: #{tpu_custom_call.1} parent=1 // pred_fallthru
      _
    // Predicated region
    $region22: #{tpu_custom_call.1} parent=1 // pred_check
      _
    $region23: #{tpu_custom_call.1} parent=1 // pred_check_branch
      %57 = sbr.rel (0) target = $region25
    $region24: #{tpu_custom_call.1} parent=1 // pred_region
      %s59 = ssub.s32 2048, 2048
      %60 = vsyncadd [#allocation9], %s59
      %s61 = sshll.u32 [#allocation8], 4
      %s62 = int_to_ptr.vmem [resolvable:$true] %s61
      %67 = dma.hbm_to_vmem [thread:$0]  %s5, 2048, %s62, [#allocation9], 128, 128, 8
    $region25: #{tpu_custom_call.1} parent=1 // pred_fallthru
      _
    // Predicated region
    $region26: #{tpu_custom_call.1} parent=1 // pred_check
      _
    $region27: #{tpu_custom_call.1} parent=1 // pred_check_branch
      %69 = sbr.rel (0) target = $region29
    $region28: #{tpu_custom_call.1} parent=1 // pred_region
      _
    $region29: #{tpu_custom_call.1} parent=1 // pred_fallthru
      _
    // Predicated region
    $region30: #{tpu_custom_call.1} parent=1 // pred_check
      _
    $region31: #{tpu_custom_call.1} parent=1 // pred_check_branch
      %71 = sbr.rel (0) target = $region33
    $region32: #{tpu_custom_call.1} parent=1 // pred_region
      _
    $region33: #{tpu_custom_call.1} parent=1 // pred_fallthru
      _
    // Predicated region
    $region34: #{tpu_custom_call.1} parent=1 // pred_check
      _
    $region35: #{tpu_custom_call.1} parent=1 // pred_check_branch
      %73 = sbr.rel (0) target = $region37
    $region36: #{tpu_custom_call.1} parent=1 // pred_region
      _
    $region37: #{tpu_custom_call.1} parent=1 // pred_fallthru
      _
    // Predicated region
    $region38: #{tpu_custom_call.1} parent=1 // pred_check
      _
    $region39: #{tpu_custom_call.1} parent=1 // pred_check_branch
      %75 = sbr.rel (0) target = $region41
    $region40: #{tpu_custom_call.1} parent=1 // pred_region
      %76 = dma.done [#allocation3], 128
    $region41: #{tpu_custom_call.1} parent=1 // pred_fallthru
      _
    // Predicated region
    $region42: #{tpu_custom_call.1} parent=1 // pred_check
      _
    $region43: #{tpu_custom_call.1} parent=1 // pred_check_branch
      %78 = sbr.rel (0) target = $region45
    $region44: #{tpu_custom_call.1} parent=1 // pred_region
      %79 = dma.done [#allocation6], 256
    $region45: #{tpu_custom_call.1} parent=1 // pred_fallthru
      _
    // Predicated region
    $region46: #{tpu_custom_call.1} parent=1 // pred_check
      _
    $region47: #{tpu_custom_call.1} parent=1 // pred_check_branch
      %81 = sbr.rel (0) target = $region49
    $region48: #{tpu_custom_call.1} parent=1 // pred_region
      %82 = dma.done [#allocation6], 2048
    $region49: #{tpu_custom_call.1} parent=1 // pred_fallthru
      _
    // Predicated region
    $region50: #{tpu_custom_call.1} parent=1 // pred_check
      _
    $region51: #{tpu_custom_call.1} parent=1 // pred_check_branch
      %84 = sbr.rel (0) target = $region53
    $region52: #{tpu_custom_call.1} parent=1 // pred_region
      %85 = dma.done [#allocation9], 2048
    $region53: #{tpu_custom_call.1} parent=1 // pred_fallthru
      _
    %v86 = vld [vmem:[#allocation2] sm:$0xff]
    %v87 = vld [vmem:[#allocation5] sm:$0xff]
    %v88 = vld [vmem:[#allocation5 + $0x8] sm:$0xff]
    %v89 = vld [vmem:[%s2] sm:$0x1]
    %v91 = vlaneseq
    %v92 = vshrl.u32 %v91, 7
    %v93 = vsub.s32 0, %v92
    %v94 = vrot.slane %v89, %v93
    %vm96 = vcmask 130048
    %v98 = vsel %vm96, %v86, 0
    %100 = vmatprep.subr.mxu0 0.0
    %101 = vmatpush1.msra.mxu0 %v87
    %102 = vmatprep.subr.mxu0 0.0
    %103 = vmatpush1.msra.mxu0 %v88
    %104 = vmatprep.subr.mxu0 0.0
    %105 = vmatpush1.msra.mxu0 0.0
    %106 = vmatprep.subr.mxu0 0.0
    %107 = vmatpush1.msra.mxu0 0.0
    %108 = vmatprep.subr.mxu0 0.0
    %109 = vmatpush1.msra.mxu0 0.0
    %110 = vmatprep.subr.mxu0 0.0
    %111 = vmatpush1.msra.mxu0 0.0
    %112 = vmatprep.subr.mxu0 0.0
    %113 = vmatpush1.msra.mxu0 0.0
    %114 = vmatprep.subr.mxu0 0.0
    %115 = vmatpush1.msra.mxu0 0.0
    %116 = vmatprep.subr.mxu0 0.0
    %117 = vmatpush1.msra.mxu0 0.0
    %118 = vmatprep.subr.mxu0 0.0
    %119 = vmatpush1.msra.mxu0 0.0
    %120 = vmatprep.subr.mxu0 0.0
    %121 = vmatpush1.msra.mxu0 0.0
    %122 = vmatprep.subr.mxu0 0.0
    %123 = vmatpush1.msra.mxu0 0.0
    %124 = vmatprep.subr.mxu0 0.0
    %125 = vmatpush1.msra.mxu0 0.0
    %126 = vmatprep.subr.mxu0 0.0
    %127 = vmatpush1.msra.mxu0 0.0
    %128 = vmatprep.subr.mxu0 0.0
    %129 = vmatpush1.msra.mxu0 0.0
    %130 = vmatprep.subr.mxu0 0.0
    %131 = vmatpush1.msra.mxu0 0.0
    %132 = vmatprep.subr.mxu0 0.0
    %133 = vmatpush1.msra.mxu0 0.0
    %134 = vmatprep.subr.mxu0 0.0
    %135 = vmatpush1.msra.mxu0 0.0
    %136 = vmatprep.subr.mxu0 0.0
    %137 = vmatpush1.msra.mxu0 0.0
    %138 = vmatprep.subr.mxu0 0.0
    %139 = vmatpush1.msra.mxu0 0.0
    %140 = vmatprep.subr.mxu0 0.0
    %141 = vmatpush1.msra.mxu0 0.0
    %142 = vmatprep.subr.mxu0 0.0
    %143 = vmatpush1.msra.mxu0 0.0
    %144 = vmatprep.subr.mxu0 0.0
    %145 = vmatpush1.msra.mxu0 0.0
    %146 = vmatprep.subr.mxu0 0.0
    %147 = vmatpush1.msra.mxu0 0.0
    %148 = vmatprep.subr.mxu0 0.0
    %149 = vmatpush1.msra.mxu0 0.0
    %150 = vmatprep.subr.mxu0 0.0
    %151 = vmatpush1.msra.mxu0 0.0
    %152 = vmatprep.subr.mxu0 0.0
    %153 = vmatpush1.msra.mxu0 0.0
    %154 = vmatprep.subr.mxu0 0.0
    %155 = vmatpush1.msra.mxu0 0.0
    %156 = vmatprep.subr.mxu0 0.0
    %157 = vmatpush1.msra.mxu0 0.0
    %158 = vmatprep.subr.mxu0 0.0
    %159 = vmatpush1.msra.mxu0 0.0
    %160 = vmatprep.subr.mxu0 0.0
    %161 = vmatpush1.msra.mxu0 0.0
    %162 = vmatprep.subr.mxu0 0.0
    %163 = vmatpush1.msra.mxu0 0.0
    %164 = vmatprep.mubr.f32.mxu0 0.0
    %165 = vmatmul.mubr.f32.gmra.mrb[0].mxu0 %v98
    %v166 = vpop.f32.mrb[0].mxu0
    %v167 = vadd.f32 %v94, %v166
    %v168 = vpop.f32.mrb[0].mxu0
    %169 = vdwg.mxu0
    %v170 = vmax.f32 %v167, 0.0
    %v171 = vld [vmem:[#allocation7] sm:$0xff]
    %v172 = vld [vmem:[#allocation7 + $0x8] sm:$0xff]
    %v173 = vld [vmem:[#allocation7 + $0x10] sm:$0xff]
    %v174 = vld [vmem:[#allocation7 + $0x18] sm:$0xff]
    %v175 = vld [vmem:[#allocation7 + $0x20] sm:$0xff]
    %v176 = vld [vmem:[#allocation7 + $0x28] sm:$0xff]
    %v177 = vld [vmem:[#allocation7 + $0x30] sm:$0xff]
    %v178 = vld [vmem:[#allocation7 + $0x38] sm:$0xff]
    %v179 = vld [vmem:[#allocation7 + $0x40] sm:$0xff]
    %v180 = vld [vmem:[#allocation7 + $0x48] sm:$0xff]
    %v181 = vld [vmem:[#allocation7 + $0x50] sm:$0xff]
    %v182 = vld [vmem:[#allocation7 + $0x58] sm:$0xff]
    %v183 = vld [vmem:[#allocation7 + $0x60] sm:$0xff]
    %v184 = vld [vmem:[#allocation7 + $0x68] sm:$0xff]
    %v185 = vld [vmem:[#allocation7 + $0x70] sm:$0xff]
    %v186 = vld [vmem:[#allocation7 + $0x78] sm:$0xff]
    %v187 = vld [vmem:[%s4] sm:$0x1]
    %v189 = vlaneseq
    %v190 = vshrl.u32 %v189, 7
    %v191 = vsub.s32 0, %v190
    %v192 = vrot.slane %v187, %v191
    %194 = vmatprep.subr.mxu0 0.0
    %195 = vmatpush1.msra.mxu0 %v171
    %196 = vmatprep.subr.mxu0 0.0
    %197 = vmatpush1.msra.mxu0 %v172
    %198 = vmatprep.subr.mxu0 0.0
    %199 = vmatpush1.msra.mxu0 %v173
    %200 = vmatprep.subr.mxu0 0.0
    %201 = vmatpush1.msra.mxu0 %v174
    %202 = vmatprep.subr.mxu0 0.0
    %203 = vmatpush1.msra.mxu0 %v175
    %204 = vmatprep.subr.mxu0 0.0
    %205 = vmatpush1.msra.mxu0 %v176
    %206 = vmatprep.subr.mxu0 0.0
    %207 = vmatpush1.msra.mxu0 %v177
    %208 = vmatprep.subr.mxu0 0.0
    %209 = vmatpush1.msra.mxu0 %v178
    %210 = vmatprep.subr.mxu0 0.0
    %211 = vmatpush1.msra.mxu0 %v179
    %212 = vmatprep.subr.mxu0 0.0
    %213 = vmatpush1.msra.mxu0 %v180
    %214 = vmatprep.subr.mxu0 0.0
    %215 = vmatpush1.msra.mxu0 %v181
    %216 = vmatprep.subr.mxu0 0.0
    %217 = vmatpush1.msra.mxu0 %v182
    %218 = vmatprep.subr.mxu0 0.0
    %219 = vmatpush1.msra.mxu0 %v183
    %220 = vmatprep.subr.mxu0 0.0
    %221 = vmatpush1.msra.mxu0 %v184
    %222 = vmatprep.subr.mxu0 0.0
    %223 = vmatpush1.msra.mxu0 %v185
    %224 = vmatprep.subr.mxu0 0.0
    %225 = vmatpush1.msra.mxu0 %v186
    %226 = vmatprep.subr.mxu0 0.0
    %227 = vmatpush1.msra.mxu0 0.0
    %228 = vmatprep.subr.mxu0 0.0
    %229 = vmatpush1.msra.mxu0 0.0
    %230 = vmatprep.subr.mxu0 0.0
    %231 = vmatpush1.msra.mxu0 0.0
    %232 = vmatprep.subr.mxu0 0.0
    %233 = vmatpush1.msra.mxu0 0.0
    %234 = vmatprep.subr.mxu0 0.0
    %235 = vmatpush1.msra.mxu0 0.0
    %236 = vmatprep.subr.mxu0 0.0
    %237 = vmatpush1.msra.mxu0 0.0
    %238 = vmatprep.subr.mxu0 0.0
    %239 = vmatpush1.msra.mxu0 0.0
    %240 = vmatprep.subr.mxu0 0.0
    %241 = vmatpush1.msra.mxu0 0.0
    %242 = vmatprep.subr.mxu0 0.0
    %243 = vmatpush1.msra.mxu0 0.0
    %244 = vmatprep.subr.mxu0 0.0
    %245 = vmatpush1.msra.mxu0 0.0
    %246 = vmatprep.subr.mxu0 0.0
    %247 = vmatpush1.msra.mxu0 0.0
    %248 = vmatprep.subr.mxu0 0.0
    %249 = vmatpush1.msra.mxu0 0.0
    %250 = vmatprep.subr.mxu0 0.0
    %251 = vmatpush1.msra.mxu0 0.0
    %252 = vmatprep.subr.mxu0 0.0
    %253 = vmatpush1.msra.mxu0 0.0
    %254 = vmatprep.subr.mxu0 0.0
    %255 = vmatpush1.msra.mxu0 0.0
    %256 = vmatprep.subr.mxu0 0.0
    %257 = vmatpush1.msra.mxu0 0.0
    %258 = vmatprep.mubr.f32.mxu0 0.0
    %259 = vmatmul.mubr.f32.gmra.mrb[0].mxu0 %v170
    %v260 = vpop.f32.mrb[0].mxu0
    %v261 = vadd.f32 %v192, %v260
    %v262 = vpop.f32.mrb[0].mxu0
    %263 = vdwg.mxu0
    %v264 = vmax.f32 %v261, 0.0
    %v265 = vld [vmem:[#allocation8] sm:$0xff]
    %v266 = vld [vmem:[#allocation8 + $0x8] sm:$0xff]
    %v267 = vld [vmem:[#allocation8 + $0x10] sm:$0xff]
    %v268 = vld [vmem:[#allocation8 + $0x18] sm:$0xff]
    %v269 = vld [vmem:[#allocation8 + $0x20] sm:$0xff]
    %v270 = vld [vmem:[#allocation8 + $0x28] sm:$0xff]
    %v271 = vld [vmem:[#allocation8 + $0x30] sm:$0xff]
    %v272 = vld [vmem:[#allocation8 + $0x38] sm:$0xff]
    %v273 = vld [vmem:[#allocation8 + $0x40] sm:$0xff]
    %v274 = vld [vmem:[#allocation8 + $0x48] sm:$0xff]
    %v275 = vld [vmem:[#allocation8 + $0x50] sm:$0xff]
    %v276 = vld [vmem:[#allocation8 + $0x58] sm:$0xff]
    %v277 = vld [vmem:[#allocation8 + $0x60] sm:$0xff]
    %v278 = vld [vmem:[#allocation8 + $0x68] sm:$0xff]
    %v279 = vld [vmem:[#allocation8 + $0x70] sm:$0xff]
    %v280 = vld [vmem:[#allocation8 + $0x78] sm:$0xff]
    %v281 = vld [vmem:[%s6] sm:$0x1]
    %v283 = vlaneseq
    %v284 = vshrl.u32 %v283, 7
    %v285 = vsub.s32 0, %v284
    %v286 = vrot.slane %v281, %v285
    %288 = vmatprep.subr.mxu0 0.0
    %289 = vmatpush1.msra.mxu0 %v265
    %290 = vmatprep.subr.mxu0 0.0
    %291 = vmatpush1.msra.mxu0 %v266
    %292 = vmatprep.subr.mxu0 0.0
    %293 = vmatpush1.msra.mxu0 %v267
    %294 = vmatprep.subr.mxu0 0.0
    %295 = vmatpush1.msra.mxu0 %v268
    %296 = vmatprep.subr.mxu0 0.0
    %297 = vmatpush1.msra.mxu0 %v269
    %298 = vmatprep.subr.mxu0 0.0
    %299 = vmatpush1.msra.mxu0 %v270
    %300 = vmatprep.subr.mxu0 0.0
    %301 = vmatpush1.msra.mxu0 %v271
    %302 = vmatprep.subr.mxu0 0.0
    %303 = vmatpush1.msra.mxu0 %v272
    %304 = vmatprep.subr.mxu0 0.0
    %305 = vmatpush1.msra.mxu0 %v273
    %306 = vmatprep.subr.mxu0 0.0
    %307 = vmatpush1.msra.mxu0 %v274
    %308 = vmatprep.subr.mxu0 0.0
    %309 = vmatpush1.msra.mxu0 %v275
    %310 = vmatprep.subr.mxu0 0.0
    %311 = vmatpush1.msra.mxu0 %v276
    %312 = vmatprep.subr.mxu0 0.0
    %313 = vmatpush1.msra.mxu0 %v277
    %314 = vmatprep.subr.mxu0 0.0
    %315 = vmatpush1.msra.mxu0 %v278
    %316 = vmatprep.subr.mxu0 0.0
    %317 = vmatpush1.msra.mxu0 %v279
    %318 = vmatprep.subr.mxu0 0.0
    %319 = vmatpush1.msra.mxu0 %v280
    %320 = vmatprep.subr.mxu0 0.0
    %321 = vmatpush1.msra.mxu0 0.0
    %322 = vmatprep.subr.mxu0 0.0
    %323 = vmatpush1.msra.mxu0 0.0
    %324 = vmatprep.subr.mxu0 0.0
    %325 = vmatpush1.msra.mxu0 0.0
    %326 = vmatprep.subr.mxu0 0.0
    %327 = vmatpush1.msra.mxu0 0.0
    %328 = vmatprep.subr.mxu0 0.0
    %329 = vmatpush1.msra.mxu0 0.0
    %330 = vmatprep.subr.mxu0 0.0
    %331 = vmatpush1.msra.mxu0 0.0
    %332 = vmatprep.subr.mxu0 0.0
    %333 = vmatpush1.msra.mxu0 0.0
    %334 = vmatprep.subr.mxu0 0.0
    %335 = vmatpush1.msra.mxu0 0.0
    %336 = vmatprep.subr.mxu0 0.0
    %337 = vmatpush1.msra.mxu0 0.0
    %338 = vmatprep.subr.mxu0 0.0
    %339 = vmatpush1.msra.mxu0 0.0
    %340 = vmatprep.subr.mxu0 0.0
    %341 = vmatpush1.msra.mxu0 0.0
    %342 = vmatprep.subr.mxu0 0.0
    %343 = vmatpush1.msra.mxu0 0.0
    %344 = vmatprep.subr.mxu0 0.0
    %345 = vmatpush1.msra.mxu0 0.0
    %346 = vmatprep.subr.mxu0 0.0
    %347 = vmatpush1.msra.mxu0 0.0
    %348 = vmatprep.subr.mxu0 0.0
    %349 = vmatpush1.msra.mxu0 0.0
    %350 = vmatprep.subr.mxu0 0.0
    %351 = vmatpush1.msra.mxu0 0.0
    %352 = vmatprep.mubr.f32.mxu0 0.0
    %353 = vmatmul.mubr.f32.gmra.mrb[0].mxu0 %v264
    %v354 = vpop.f32.mrb[0].mxu0
    %v355 = vadd.f32 %v286, %v354
    %v356 = vpop.f32.mrb[0].mxu0
    %357 = vdwg.mxu0
    %v358 = vld [vmem:[%s7] sm:$0x1]
    %v360 = vlaneseq
    %v361 = vshrl.u32 %v360, 7
    %v362 = vsub.s32 0, %v361
    %v363 = vrot.slane %v358, %v362
    %v365 = vmax.f32 %v355, %v363
    %v366 = vld [vmem:[%s8] sm:$0x1]
    %v368 = vlaneseq
    %v369 = vshrl.u32 %v368, 7
    %v370 = vsub.s32 0, %v369
    %v371 = vrot.slane %v366, %v370
    %v373 = vmin.f32 %v365, %v371
    %374 = vst [vmem:[#allocation10] sm:$0xff] %v373
    // Predicated region
    $region54: #{tpu_custom_call.1} parent=1 // pred_check
      _
    $region55: #{tpu_custom_call.1} parent=1 // pred_check_branch
      %376 = sbr.rel (0) target = $region57
    $region56: #{tpu_custom_call.1} parent=1 // pred_region
      %s378 = ssub.s32 128, 128
      %379 = vsyncadd [#allocation4], %s378
      %s381 = sshll.u32 [#allocation10], 4
      %s382 = int_to_ptr.vmem [resolvable:$true] %s381
      %384 = dma.vmem_to_hbm [thread:$0]  %s382, 128, %s9, [#allocation4]
    $region57: #{tpu_custom_call.1} parent=1 // pred_fallthru
      _
    // Predicated region
    $region58: #{tpu_custom_call.1} parent=1 // pred_check
      _
    $region59: #{tpu_custom_call.1} parent=1 // pred_check_branch
      %386 = sbr.rel (0) target = $region61
    $region60: #{tpu_custom_call.1} parent=1 // pred_region
      %387 = dma.done [#allocation4], 128
    $region61: #{tpu_custom_call.1} parent=1 // pred_fallthru
      _
    %388 = vsyncpa [#allocation3], 1
    %389 = vsyncpa [#allocation6], 1
    %390 = vsyncpa [#allocation9], 1
    %391 = vsyncpa [#allocation4], 1

// kernel: tpu_custom_call.1
$region0: #{tpu_custom_call.1}
  #allocation0 [shape = 'u32[]', space=smem, size = 0x4, offset = 0x4, fixed_abs, tag = 'smem constant byte address 0x4 - core index']
  #allocation1 [shape = 'u32[144,128]{1,0:T(1,128)}', space=vmem, size = 0x12000, scoped, tag = 'internal scratch']
  %s0 = inlined_call_operand.hbm [shape: f32[8,16], index: 0, kind: input, shape index: {}]
  %s1 = inlined_call_operand.hbm [shape: f32[16,128], index: 1, kind: input, shape index: {}]
  %s2 = inlined_call_operand.vmem [shape: f32[1,128], index: 2, kind: input, shape index: {}]
  %s3 = inlined_call_operand.hbm [shape: f32[128,128], index: 3, kind: input, shape index: {}]
  %s4 = inlined_call_operand.vmem [shape: f32[1,128], index: 4, kind: input, shape index: {}]
  %s5 = inlined_call_operand.hbm [shape: f32[128,128], index: 5, kind: input, shape index: {}]
  %s6 = inlined_call_operand.vmem [shape: f32[1,128], index: 6, kind: input, shape index: {}]
  %s7 = inlined_call_operand.vmem [shape: f32[1,128], index: 7, kind: input, shape index: {}]
  %s8 = inlined_call_operand.vmem [shape: f32[1,128], index: 8, kind: input, shape index: {}]
  %s9 = inlined_call_operand.hbm [shape: f32[8,128], index: 9, kind: output, shape index: {}]
  %s10 = sld [smem:[#allocation0]]
  $region62: #{tpu_custom_call.1} parent=0
    _
  %s12 = ssub.s32 1, %s10
  %s13 = scalar_select 0, %s12, %s10
  $region1: #{tpu_custom_call.1} parent=0
    #allocation2 [shape = 'u8[4096]{0}', space=vmem, size = 0x1000, scoped, tag = 'input window, operand 0, single buffered']
    #allocation3 [shape = 's32[1]{0}', space=sflag, size = 0x4, scoped, tag = 'scoped memory for tpu_custom_call.1']
    #allocation4 [shape = 's32[1]{0}', space=sflag, size = 0x4, scoped, tag = 'scoped memory for tpu_custom_call.1']
    #allocation5 [shape = 'u8[8192]{0}', space=vmem, size = 0x2000, scoped, tag = 'input window, operand 1, single buffered']
    #allocation6 [shape = 's32[1]{0}', space=sflag, size = 0x4, scoped, tag = 'scoped memory for tpu_custom_call.1']
    #allocation7 [shape = 'u8[65536]{0}', space=vmem, size = 0x10000, scoped, tag = 'input window, operand 3, single buffered']
    #allocation8 [shape = 'u8[65536]{0}', space=vmem, size = 0x10000, scoped, tag = 'input window, operand 5, single buffered']
    #allocation9 [shape = 's32[1]{0}', space=sflag, size = 0x4, scoped, tag = 'scoped memory for tpu_custom_call.1']
    #allocation10 [shape = 'u8[4096]{0}', space=vmem, size = 0x1000, scoped, tag = 'output window, operand 0, single buffered']
    %14 = vsyncpa [#allocation3], 0
    %15 = vsyncpa [#allocation6], 0
    %16 = vsyncpa [#allocation9], 0
    %17 = vsyncpa [#allocation4], 0
    // Predicated region
    $region2: #{tpu_custom_call.1} parent=1 // pred_check
      _
    $region3: #{tpu_custom_call.1} parent=1 // pred_check_branch
      %19 = sbr.rel (0) target = $region5
    $region4: #{tpu_custom_call.1} parent=1 // pred_region
      %s21 = ssub.s32 128, 128
      %22 = vsyncadd [#allocation3], %s21
      %s24 = sshll.u32 [#allocation2], 4
      %s25 = int_to_ptr.vmem [resolvable:$true] %s24
      %27 = dma.hbm_to_vmem [thread:$0]  %s0, 128, %s25, [#allocation3]
    $region5: #{tpu_custom_call.1} parent=1 // pred_fallthru
      _
    // Predicated region
    $region6: #{tpu_custom_call.1} parent=1 // pred_check
      _
    $region7: #{tpu_custom_call.1} parent=1 // pred_check_branch
      %29 = sbr.rel (0) target = $region9
    $region8: #{tpu_custom_call.1} parent=1 // pred_region
      %s31 = ssub.s32 256, 256
      %32 = vsyncadd [#allocation6], %s31
      %s33 = sshll.u32 [#allocation5], 4
      %s34 = int_to_ptr.vmem [resolvable:$true] %s33
      %39 = dma.hbm_to_vmem [thread:$0]  %s1, 256, %s34, [#allocation6], 128, 128, 8
    $region9: #{tpu_custom_call.1} parent=1 // pred_fallthru
      _
    // Predicated region
    $region10: #{tpu_custom_call.1} parent=1 // pred_check
      _
    $region11: #{tpu_custom_call.1} parent=1 // pred_check_branch
      %41 = sbr.rel (0) target = $region13
    $region12: #{tpu_custom_call.1} parent=1 // pred_region
      _
    $region13: #{tpu_custom_call.1} parent=1 // pred_fallthru
      _
    // Predicated region
    $region14: #{tpu_custom_call.1} parent=1 // pred_check
      _
    $region15: #{tpu_custom_call.1} parent=1 // pred_check_branch
      %43 = sbr.rel (0) target = $region17
    $region16: #{tpu_custom_call.1} parent=1 // pred_region
      %s45 = ssub.s32 2048, 2048
      %46 = vsyncadd [#allocation6], %s45
      %s47 = sshll.u32 [#allocation7], 4
      %s48 = int_to_ptr.vmem [resolvable:$true] %s47
      %53 = dma.hbm_to_vmem [thread:$0]  %s3, 2048, %s48, [#allocation6], 128, 128, 8
    $region17: #{tpu_custom_call.1} parent=1 // pred_fallthru
      _
    // Predicated region
    $region18: #{tpu_custom_call.1} parent=1 // pred_check
      _
    $region19: #{tpu_custom_call.1} parent=1 // pred_check_branch
      %55 = sbr.rel (0) target = $region21
    $region20: #{tpu_custom_call.1} parent=1 // pred_region
      _
    $region21: #{tpu_custom_call.1} parent=1 // pred_fallthru
      _
    // Predicated region
    $region22: #{tpu_custom_call.1} parent=1 // pred_check
      _
    $region23: #{tpu_custom_call.1} parent=1 // pred_check_branch
      %57 = sbr.rel (0) target = $region25
    $region24: #{tpu_custom_call.1} parent=1 // pred_region
      %s59 = ssub.s32 2048, 2048
      %60 = vsyncadd [#allocation9], %s59
      %s61 = sshll.u32 [#allocation8], 4
      %s62 = int_to_ptr.vmem [resolvable:$true] %s61
      %67 = dma.hbm_to_vmem [thread:$0]  %s5, 2048, %s62, [#allocation9], 128, 128, 8
    $region25: #{tpu_custom_call.1} parent=1 // pred_fallthru
      _
    // Predicated region
    $region26: #{tpu_custom_call.1} parent=1 // pred_check
      _
    $region27: #{tpu_custom_call.1} parent=1 // pred_check_branch
      %69 = sbr.rel (0) target = $region29
    $region28: #{tpu_custom_call.1} parent=1 // pred_region
      _
    $region29: #{tpu_custom_call.1} parent=1 // pred_fallthru
      _
    // Predicated region
    $region30: #{tpu_custom_call.1} parent=1 // pred_check
      _
    $region31: #{tpu_custom_call.1} parent=1 // pred_check_branch
      %71 = sbr.rel (0) target = $region33
    $region32: #{tpu_custom_call.1} parent=1 // pred_region
      _
    $region33: #{tpu_custom_call.1} parent=1 // pred_fallthru
      _
    // Predicated region
    $region34: #{tpu_custom_call.1} parent=1 // pred_check
      _
    $region35: #{tpu_custom_call.1} parent=1 // pred_check_branch
      %73 = sbr.rel (0) target = $region37
    $region36: #{tpu_custom_call.1} parent=1 // pred_region
      _
    $region37: #{tpu_custom_call.1} parent=1 // pred_fallthru
      _
    // Predicated region
    $region38: #{tpu_custom_call.1} parent=1 // pred_check
      _
    $region39: #{tpu_custom_call.1} parent=1 // pred_check_branch
      %75 = sbr.rel (0) target = $region41
    $region40: #{tpu_custom_call.1} parent=1 // pred_region
      %76 = dma.done [#allocation3], 128
    $region41: #{tpu_custom_call.1} parent=1 // pred_fallthru
      _
    // Predicated region
    $region42: #{tpu_custom_call.1} parent=1 // pred_check
      _
    $region43: #{tpu_custom_call.1} parent=1 // pred_check_branch
      %78 = sbr.rel (0) target = $region45
    $region44: #{tpu_custom_call.1} parent=1 // pred_region
      %79 = dma.done [#allocation6], 256
    $region45: #{tpu_custom_call.1} parent=1 // pred_fallthru
      _
    // Predicated region
    $region46: #{tpu_custom_call.1} parent=1 // pred_check
      _
    $region47: #{tpu_custom_call.1} parent=1 // pred_check_branch
      %81 = sbr.rel (0) target = $region49
    $region48: #{tpu_custom_call.1} parent=1 // pred_region
      %82 = dma.done [#allocation6], 2048
    $region49: #{tpu_custom_call.1} parent=1 // pred_fallthru
      _
    // Predicated region
    $region50: #{tpu_custom_call.1} parent=1 // pred_check
      _
    $region51: #{tpu_custom_call.1} parent=1 // pred_check_branch
      %84 = sbr.rel (0) target = $region53
    $region52: #{tpu_custom_call.1} parent=1 // pred_region
      %85 = dma.done [#allocation9], 2048
    $region53: #{tpu_custom_call.1} parent=1 // pred_fallthru
      _
    %v86 = vld [vmem:[#allocation2] sm:$0xff]
    %v87 = vld [vmem:[#allocation5] sm:$0xff]
    %v88 = vld [vmem:[#allocation5 + $0x8] sm:$0xff]
    %v89 = vld [vmem:[%s2] sm:$0x1]
    %v91 = vlaneseq
    %v92 = vshrl.u32 %v91, 7
    %v93 = vsub.s32 0, %v92
    %v94 = vrot.slane %v89, %v93
    %vm96 = vcmask 130048
    %v98 = vsel %vm96, %v86, 0
    %100 = vmatprep.subr.mxu0 0.0
    %101 = vmatpush1.msra.mxu0 %v87
    %102 = vmatprep.subr.mxu0 0.0
    %103 = vmatpush1.msra.mxu0 %v88
    %104 = vmatprep.subr.mxu0 0.0
    %105 = vmatpush1.msra.mxu0 0.0
    %106 = vmatprep.subr.mxu0 0.0
    %107 = vmatpush1.msra.mxu0 0.0
    %108 = vmatprep.subr.mxu0 0.0
    %109 = vmatpush1.msra.mxu0 0.0
    %110 = vmatprep.subr.mxu0 0.0
    %111 = vmatpush1.msra.mxu0 0.0
    %112 = vmatprep.subr.mxu0 0.0
    %113 = vmatpush1.msra.mxu0 0.0
    %114 = vmatprep.subr.mxu0 0.0
    %115 = vmatpush1.msra.mxu0 0.0
    %116 = vmatprep.subr.mxu0 0.0
    %117 = vmatpush1.msra.mxu0 0.0
    %118 = vmatprep.subr.mxu0 0.0
    %119 = vmatpush1.msra.mxu0 0.0
    %120 = vmatprep.subr.mxu0 0.0
    %121 = vmatpush1.msra.mxu0 0.0
    %122 = vmatprep.subr.mxu0 0.0
    %123 = vmatpush1.msra.mxu0 0.0
    %124 = vmatprep.subr.mxu0 0.0
    %125 = vmatpush1.msra.mxu0 0.0
    %126 = vmatprep.subr.mxu0 0.0
    %127 = vmatpush1.msra.mxu0 0.0
    %128 = vmatprep.subr.mxu0 0.0
    %129 = vmatpush1.msra.mxu0 0.0
    %130 = vmatprep.subr.mxu0 0.0
    %131 = vmatpush1.msra.mxu0 0.0
    %132 = vmatprep.subr.mxu0 0.0
    %133 = vmatpush1.msra.mxu0 0.0
    %134 = vmatprep.subr.mxu0 0.0
    %135 = vmatpush1.msra.mxu0 0.0
    %136 = vmatprep.subr.mxu0 0.0
    %137 = vmatpush1.msra.mxu0 0.0
    %138 = vmatprep.subr.mxu0 0.0
    %139 = vmatpush1.msra.mxu0 0.0
    %140 = vmatprep.subr.mxu0 0.0
    %141 = vmatpush1.msra.mxu0 0.0
    %142 = vmatprep.subr.mxu0 0.0
    %143 = vmatpush1.msra.mxu0 0.0
    %144 = vmatprep.subr.mxu0 0.0
    %145 = vmatpush1.msra.mxu0 0.0
    %146 = vmatprep.subr.mxu0 0.0
    %147 = vmatpush1.msra.mxu0 0.0
    %148 = vmatprep.subr.mxu0 0.0
    %149 = vmatpush1.msra.mxu0 0.0
    %150 = vmatprep.subr.mxu0 0.0
    %151 = vmatpush1.msra.mxu0 0.0
    %152 = vmatprep.subr.mxu0 0.0
    %153 = vmatpush1.msra.mxu0 0.0
    %154 = vmatprep.subr.mxu0 0.0
    %155 = vmatpush1.msra.mxu0 0.0
    %156 = vmatprep.subr.mxu0 0.0
    %157 = vmatpush1.msra.mxu0 0.0
    %158 = vmatprep.subr.mxu0 0.0
    %159 = vmatpush1.msra.mxu0 0.0
    %160 = vmatprep.subr.mxu0 0.0
    %161 = vmatpush1.msra.mxu0 0.0
    %162 = vmatprep.subr.mxu0 0.0
    %163 = vmatpush1.msra.mxu0 0.0
    %164 = vmatprep.mubr.f32.mxu0 0.0
    %165 = vmatmul.mubr.f32.gmra.mrb[0].mxu0 %v98
    %v166 = vpop.f32.mrb[0].mxu0
    %v167 = vadd.f32 %v94, %v166
    %v168 = vpop.f32.mrb[0].mxu0
    %169 = vdwg.mxu0
    %v170 = vmax.f32 %v167, 0.0
    %v171 = vld [vmem:[#allocation7] sm:$0xff]
    %v172 = vld [vmem:[#allocation7 + $0x8] sm:$0xff]
    %v173 = vld [vmem:[#allocation7 + $0x10] sm:$0xff]
    %v174 = vld [vmem:[#allocation7 + $0x18] sm:$0xff]
    %v175 = vld [vmem:[#allocation7 + $0x20] sm:$0xff]
    %v176 = vld [vmem:[#allocation7 + $0x28] sm:$0xff]
    %v177 = vld [vmem:[#allocation7 + $0x30] sm:$0xff]
    %v178 = vld [vmem:[#allocation7 + $0x38] sm:$0xff]
    %v179 = vld [vmem:[#allocation7 + $0x40] sm:$0xff]
    %v180 = vld [vmem:[#allocation7 + $0x48] sm:$0xff]
    %v181 = vld [vmem:[#allocation7 + $0x50] sm:$0xff]
    %v182 = vld [vmem:[#allocation7 + $0x58] sm:$0xff]
    %v183 = vld [vmem:[#allocation7 + $0x60] sm:$0xff]
    %v184 = vld [vmem:[#allocation7 + $0x68] sm:$0xff]
    %v185 = vld [vmem:[#allocation7 + $0x70] sm:$0xff]
    %v186 = vld [vmem:[#allocation7 + $0x78] sm:$0xff]
    %v187 = vld [vmem:[%s4] sm:$0x1]
    %v189 = vlaneseq
    %v190 = vshrl.u32 %v189, 7
    %v191 = vsub.s32 0, %v190
    %v192 = vrot.slane %v187, %v191
    %194 = vmatprep.subr.mxu0 0.0
    %195 = vmatpush1.msra.mxu0 %v171
    %196 = vmatprep.subr.mxu0 0.0
    %197 = vmatpush1.msra.mxu0 %v172
    %198 = vmatprep.subr.mxu0 0.0
    %199 = vmatpush1.msra.mxu0 %v173
    %200 = vmatprep.subr.mxu0 0.0
    %201 = vmatpush1.msra.mxu0 %v174
    %202 = vmatprep.subr.mxu0 0.0
    %203 = vmatpush1.msra.mxu0 %v175
    %204 = vmatprep.subr.mxu0 0.0
    %205 = vmatpush1.msra.mxu0 %v176
    %206 = vmatprep.subr.mxu0 0.0
    %207 = vmatpush1.msra.mxu0 %v177
    %208 = vmatprep.subr.mxu0 0.0
    %209 = vmatpush1.msra.mxu0 %v178
    %210 = vmatprep.subr.mxu0 0.0
    %211 = vmatpush1.msra.mxu0 %v179
    %212 = vmatprep.subr.mxu0 0.0
    %213 = vmatpush1.msra.mxu0 %v180
    %214 = vmatprep.subr.mxu0 0.0
    %215 = vmatpush1.msra.mxu0 %v181
    %216 = vmatprep.subr.mxu0 0.0
    %217 = vmatpush1.msra.mxu0 %v182
    %218 = vmatprep.subr.mxu0 0.0
    %219 = vmatpush1.msra.mxu0 %v183
    %220 = vmatprep.subr.mxu0 0.0
    %221 = vmatpush1.msra.mxu0 %v184
    %222 = vmatprep.subr.mxu0 0.0
    %223 = vmatpush1.msra.mxu0 %v185
    %224 = vmatprep.subr.mxu0 0.0
    %225 = vmatpush1.msra.mxu0 %v186
    %226 = vmatprep.subr.mxu0 0.0
    %227 = vmatpush1.msra.mxu0 0.0
    %228 = vmatprep.subr.mxu0 0.0
    %229 = vmatpush1.msra.mxu0 0.0
    %230 = vmatprep.subr.mxu0 0.0
    %231 = vmatpush1.msra.mxu0 0.0
    %232 = vmatprep.subr.mxu0 0.0
    %233 = vmatpush1.msra.mxu0 0.0
    %234 = vmatprep.subr.mxu0 0.0
    %235 = vmatpush1.msra.mxu0 0.0
    %236 = vmatprep.subr.mxu0 0.0
    %237 = vmatpush1.msra.mxu0 0.0
    %238 = vmatprep.subr.mxu0 0.0
    %239 = vmatpush1.msra.mxu0 0.0
    %240 = vmatprep.subr.mxu0 0.0
    %241 = vmatpush1.msra.mxu0 0.0
    %242 = vmatprep.subr.mxu0 0.0
    %243 = vmatpush1.msra.mxu0 0.0
    %244 = vmatprep.subr.mxu0 0.0
    %245 = vmatpush1.msra.mxu0 0.0
    %246 = vmatprep.subr.mxu0 0.0
    %247 = vmatpush1.msra.mxu0 0.0
    %248 = vmatprep.subr.mxu0 0.0
    %249 = vmatpush1.msra.mxu0 0.0
    %250 = vmatprep.subr.mxu0 0.0
    %251 = vmatpush1.msra.mxu0 0.0
    %252 = vmatprep.subr.mxu0 0.0
    %253 = vmatpush1.msra.mxu0 0.0
    %254 = vmatprep.subr.mxu0 0.0
    %255 = vmatpush1.msra.mxu0 0.0
    %256 = vmatprep.subr.mxu0 0.0
    %257 = vmatpush1.msra.mxu0 0.0
    %258 = vmatprep.mubr.f32.mxu0 0.0
    %259 = vmatmul.mubr.f32.gmra.mrb[0].mxu0 %v170
    %v260 = vpop.f32.mrb[0].mxu0
    %v261 = vadd.f32 %v192, %v260
    %v262 = vpop.f32.mrb[0].mxu0
    %263 = vdwg.mxu0
    %v264 = vmax.f32 %v261, 0.0
    %v265 = vld [vmem:[#allocation8] sm:$0xff]
    %v266 = vld [vmem:[#allocation8 + $0x8] sm:$0xff]
    %v267 = vld [vmem:[#allocation8 + $0x10] sm:$0xff]
    %v268 = vld [vmem:[#allocation8 + $0x18] sm:$0xff]
    %v269 = vld [vmem:[#allocation8 + $0x20] sm:$0xff]
    %v270 = vld [vmem:[#allocation8 + $0x28] sm:$0xff]
    %v271 = vld [vmem:[#allocation8 + $0x30] sm:$0xff]
    %v272 = vld [vmem:[#allocation8 + $0x38] sm:$0xff]
    %v273 = vld [vmem:[#allocation8 + $0x40] sm:$0xff]
    %v274 = vld [vmem:[#allocation8 + $0x48] sm:$0xff]
    %v275 = vld [vmem:[#allocation8 + $0x50] sm:$0xff]
    %v276 = vld [vmem:[#allocation8 + $0x58] sm:$0xff]
    %v277 = vld [vmem:[#allocation8 + $0x60] sm:$0xff]
    %v278 = vld [vmem:[#allocation8 + $0x68] sm:$0xff]
    %v279 = vld [vmem:[#allocation8 + $0x70] sm:$0xff]
    %v280 = vld [vmem:[#allocation8 + $0x78] sm:$0xff]
    %v281 = vld [vmem:[%s6] sm:$0x1]
    %v283 = vlaneseq
    %v284 = vshrl.u32 %v283, 7
    %v285 = vsub.s32 0, %v284
    %v286 = vrot.slane %v281, %v285
    %288 = vmatprep.subr.mxu0 0.0
    %289 = vmatpush1.msra.mxu0 %v265
    %290 = vmatprep.subr.mxu0 0.0
    %291 = vmatpush1.msra.mxu0 %v266
    %292 = vmatprep.subr.mxu0 0.0
    %293 = vmatpush1.msra.mxu0 %v267
    %294 = vmatprep.subr.mxu0 0.0
    %295 = vmatpush1.msra.mxu0 %v268
    %296 = vmatprep.subr.mxu0 0.0
    %297 = vmatpush1.msra.mxu0 %v269
    %298 = vmatprep.subr.mxu0 0.0
    %299 = vmatpush1.msra.mxu0 %v270
    %300 = vmatprep.subr.mxu0 0.0
    %301 = vmatpush1.msra.mxu0 %v271
    %302 = vmatprep.subr.mxu0 0.0
    %303 = vmatpush1.msra.mxu0 %v272
    %304 = vmatprep.subr.mxu0 0.0
    %305 = vmatpush1.msra.mxu0 %v273
    %306 = vmatprep.subr.mxu0 0.0
    %307 = vmatpush1.msra.mxu0 %v274
    %308 = vmatprep.subr.mxu0 0.0
    %309 = vmatpush1.msra.mxu0 %v275
    %310 = vmatprep.subr.mxu0 0.0
    %311 = vmatpush1.msra.mxu0 %v276
    %312 = vmatprep.subr.mxu0 0.0
    %313 = vmatpush1.msra.mxu0 %v277
    %314 = vmatprep.subr.mxu0 0.0
    %315 = vmatpush1.msra.mxu0 %v278
    %316 = vmatprep.subr.mxu0 0.0
    %317 = vmatpush1.msra.mxu0 %v279
    %318 = vmatprep.subr.mxu0 0.0
    %319 = vmatpush1.msra.mxu0 %v280
    %320 = vmatprep.subr.mxu0 0.0
    %321 = vmatpush1.msra.mxu0 0.0
    %322 = vmatprep.subr.mxu0 0.0
    %323 = vmatpush1.msra.mxu0 0.0
    %324 = vmatprep.subr.mxu0 0.0
    %325 = vmatpush1.msra.mxu0 0.0
    %326 = vmatprep.subr.mxu0 0.0
    %327 = vmatpush1.msra.mxu0 0.0
    %328 = vmatprep.subr.mxu0 0.0
    %329 = vmatpush1.msra.mxu0 0.0
    %330 = vmatprep.subr.mxu0 0.0
    %331 = vmatpush1.msra.mxu0 0.0
    %332 = vmatprep.subr.mxu0 0.0
    %333 = vmatpush1.msra.mxu0 0.0
    %334 = vmatprep.subr.mxu0 0.0
    %335 = vmatpush1.msra.mxu0 0.0
    %336 = vmatprep.subr.mxu0 0.0
    %337 = vmatpush1.msra.mxu0 0.0
    %338 = vmatprep.subr.mxu0 0.0
    %339 = vmatpush1.msra.mxu0 0.0
    %340 = vmatprep.subr.mxu0 0.0
    %341 = vmatpush1.msra.mxu0 0.0
    %342 = vmatprep.subr.mxu0 0.0
    %343 = vmatpush1.msra.mxu0 0.0
    %344 = vmatprep.subr.mxu0 0.0
    %345 = vmatpush1.msra.mxu0 0.0
    %346 = vmatprep.subr.mxu0 0.0
    %347 = vmatpush1.msra.mxu0 0.0
    %348 = vmatprep.subr.mxu0 0.0
    %349 = vmatpush1.msra.mxu0 0.0
    %350 = vmatprep.subr.mxu0 0.0
    %351 = vmatpush1.msra.mxu0 0.0
    %352 = vmatprep.mubr.f32.mxu0 0.0
    %353 = vmatmul.mubr.f32.gmra.mrb[0].mxu0 %v264
    %v354 = vpop.f32.mrb[0].mxu0
    %v355 = vadd.f32 %v286, %v354
    %v356 = vpop.f32.mrb[0].mxu0
    %357 = vdwg.mxu0
    %v358 = vld [vmem:[%s7] sm:$0x1]
    %v360 = vlaneseq
    %v361 = vshrl.u32 %v360, 7
    %v362 = vsub.s32 0, %v361
    %v363 = vrot.slane %v358, %v362
    %v365 = vmax.f32 %v355, %v363
    %v366 = vld [vmem:[%s8] sm:$0x1]
    %v368 = vlaneseq
    %v369 = vshrl.u32 %v368, 7
    %v370 = vsub.s32 0, %v369
    %v371 = vrot.slane %v366, %v370
    %v373 = vmin.f32 %v365, %v371
    %374 = vst [vmem:[#allocation10] sm:$0xff] %v373
    // Predicated region
    $region54: #{tpu_custom_call.1} parent=1 // pred_check
      _
    $region55: #{tpu_custom_call.1} parent=1 // pred_check_branch
      %376 = sbr.rel (0) target = $region57
    $region56: #{tpu_custom_call.1} parent=1 // pred_region
      %s378 = ssub.s32 128, 128
      %379 = vsyncadd [#allocation4], %s378
      %s381 = sshll.u32 [#allocation10], 4
      %s382 = int_to_ptr.vmem [resolvable:$true] %s381
      %384 = dma.vmem_to_hbm [thread:$0]  %s382, 128, %s9, [#allocation4]
    $region57: #{tpu_custom_call.1} parent=1 // pred_fallthru
      _
    // Predicated region
    $region58: #{tpu_custom_call.1} parent=1 // pred_check
      _
    $region59: #{tpu_custom_call.1} parent=1 // pred_check_branch
      %386 = sbr.rel (0) target = $region61
    $region60: #{tpu_custom_call.1} parent=1 // pred_region
      %387 = dma.done [#allocation4], 128
    $region61: #{tpu_custom_call.1} parent=1 // pred_fallthru
      _
    %388 = vsyncpa [#allocation3], 1
    %389 = vsyncpa [#allocation6], 1
    %390 = vsyncpa [#allocation9], 1
    %391 = vsyncpa [#allocation4], 1

</llo_original>
